<compile_context>
chip_gen: v7x
topology: tpu7x:2x2x1
jax: 0.10.0
libtpu: 0.0.40
codegen_flags: <defaults>
</compile_context>

<pallas_src>
import math
import functools

import jax
import jax.numpy as jnp
from jax.experimental import pallas as pl
from jax.experimental.pallas import tpu as pltpu


def _build_pe_table(d_model: int, max_len: int) -> jnp.ndarray:
    """Sinusoidal table identical to the PyTorch __init__ buffer.
    Returned as (max_len, d_model); the size-1 batch dim is squeezed and
    re-broadcast inside the kernel."""
    position = jnp.arange(max_len, dtype=jnp.float32)[:, None]          # (L, 1)
    div_term = jnp.exp(
        jnp.arange(0, d_model, 2, dtype=jnp.float32)
        * (-math.log(10000.0) / d_model)
    )                                                                   # (D/2,)
    pe = jnp.zeros((max_len, d_model), dtype=jnp.float32)
    pe = pe.at[:, 0::2].set(jnp.sin(position * div_term))
    pe = pe.at[:, 1::2].set(jnp.cos(position * div_term))
    return pe


def _pe_dropout_kernel(seed_ref, x_ref, pe_ref, o_ref, *,
                       batch, width, tile_rows, keep_prob, apply_dropout):
    # x_ref / o_ref : (tile_rows, width=B*D)     pe_ref : (tile_rows, D)
    pe = pe_ref[...]
    if batch > 1:
        # Broadcast pe over batch along the lane axis:
        # column j = b*D + d of x matches pe[:, d].
        pe = jnp.concatenate([pe] * batch, axis=1)          # (tile_rows, B*D)
    y = x_ref[...] + pe

    if apply_dropout:
        # Stateless counter-based PRNG ("lowbias32" mix) over the global
        # element index -> per-tile-distinct, tile-size-invariant masks,
        # integer-domain threshold (no float uniform needed).
        i = pl.program_id(0)
        row = jax.lax.broadcasted_iota(jnp.int32, y.shape, 0)
        col = jax.lax.broadcasted_iota(jnp.int32, y.shape, 1)
        idx = ((i * tile_rows + row) * width + col).astype(jnp.uint32)
        seed = seed_ref[0].astype(jnp.uint32)

        h = idx ^ (seed * jnp.uint32(0x9E3779B9))
        h = (h ^ (h >> 16)) * jnp.uint32(0x7FEB352D)
        h = (h ^ (h >> 15)) * jnp.uint32(0x846CA68B)
        h = h ^ (h >> 16)

        threshold = jnp.uint32(min(0xFFFFFFFF, int(round(keep_prob * 2.0**32))))
        scale = jnp.asarray(1.0 / keep_prob, dtype=y.dtype)
        y = jnp.where(h < threshold, y * scale, 0.0)

    o_ref[...] = y


def positional_encoding(x, pe_table, *, dropout_p=0.1, training=True, seed=0):
    """x: (S, B, D) float;  pe_table: (max_len, D) float32."""
    S, B, D = x.shape
    dtype = x.dtype
    keep_prob = 1.0 - float(dropout_p)
    apply_dropout = bool(training) and float(dropout_p) > 0.0
    if apply_dropout and keep_prob <= 0.0:
        return jnp.zeros_like(x)                      # p == 1.0: drop everything

    pe = pe_table[:S].astype(dtype)                   # (S, D), compute in x.dtype
    width = B * D
    x2 = x.reshape(S, width)                          # free row-major reshape (lane-dense)

    itemsize = jnp.dtype(dtype).itemsize
    # ~2 MiB per x-block: big enough for ~85%+ of HBM roofline, small enough to
    # double-buffer (x, pe, out) well inside default scoped VMEM on v5e/v6e/v7x.
    target_block_bytes = 2 * 1024 * 1024
    tile_rows = target_block_bytes // max(1, width * itemsize)
    if tile_rows >= S:
        tile_rows = S                                 # single full block
    else:
        tile_rows = max(8, (tile_rows // 8) * 8)      # sublane-aligned tile
    grid = (pl.cdiv(S, tile_rows),)

    seed_arr = jnp.array([int(seed)], dtype=jnp.int32)
    kernel = functools.partial(
        _pe_dropout_kernel, batch=B, width=width, tile_rows=tile_rows,
        keep_prob=keep_prob, apply_dropout=apply_dropout,
    )
    cost = pl.CostEstimate(
        flops=S * width,
        transcendentals=0,
        bytes_accessed=2 * S * width * itemsize + S * D * itemsize,
    )

    out2 = pl.pallas_call(
        kernel,
        out_shape=jax.ShapeDtypeStruct((S, width), dtype),
        grid_spec=pltpu.PrefetchScalarGridSpec(
            num_scalar_prefetch=1,                    # seed lands in SMEM
            grid=grid,
            in_specs=[
                pl.BlockSpec((tile_rows, width), lambda i, _: (i, 0)),
                pl.BlockSpec((tile_rows, D),     lambda i, _: (i, 0)),
            ],
            out_specs=pl.BlockSpec((tile_rows, width), lambda i, _: (i, 0)),
        ),
        compiler_params=pltpu.CompilerParams(
            dimension_semantics=("parallel",),        # megacore sharding on v7x
        ),
        cost_estimate=cost,
    )(seed_arr, x2, pe)
    return out2.reshape(S, B, D)


if __name__ == "__main__":
    # Small, module-consistent shapes: seq=8, batch=2, d_model=32, max_len=64.
    S, B, D = 8, 2, 32
    MAX_LEN = 64

    key = jax.random.PRNGKey(0)
    x = jax.random.normal(key, (S, B, D), dtype=jnp.float32)
    pe_table = _build_pe_table(d_model=D, max_len=MAX_LEN)

    # Eval-mode forward (dropout disabled) — must match pure-JAX reference.
    out_eval = jax.block_until_ready(
        positional_encoding(x, pe_table, dropout_p=0.1, training=False)
    )
    ref = x + pe_table[:S][:, None, :]
    assert out_eval.shape == x.shape
    assert jnp.allclose(out_eval, ref, atol=1e-6), "eval-mode mismatch"

    # Training-mode forward (in-kernel stateless-hash dropout).
    keep_prob = 0.9
    out_tr = jax.block_until_ready(
        positional_encoding(x, pe_table, dropout_p=0.1, training=True, seed=0)
    )
    # Every element is either dropped (0) or kept and scaled by 1/keep_prob.
    structural_ok = jnp.all(
        (out_tr == 0) | (jnp.abs(out_tr - ref / keep_prob) < 1e-4)
    )
    assert bool(structural_ok), "training-mode structure mismatch"
    drop_frac = float(jnp.mean((out_tr == 0).astype(jnp.float32)))
    assert 0.0 < drop_frac < 0.4, f"implausible drop fraction {drop_frac}"

    print("KERNEL_OK")
</pallas_src>

<mosaic_0001>
module attributes {stable_mosaic.version = 11 : i64} {
  func.func @_pe_dropout_kernel(%arg0: i32, %arg1: memref<1xi32, #tpu.memory_space<smem>>, %arg2: memref<8x64xf32, #tpu.memory_space<vmem>>, %arg3: memref<8x32xf32, #tpu.memory_space<vmem>>, %arg4: memref<8x64xf32, #tpu.memory_space<vmem>>) attributes {dimension_semantics = [#tpu.dimension_semantics<parallel>], iteration_bounds = array<i64: 1>, scalar_prefetch = 1 : i64, scratch_operands = 0 : i64, tpu.core_type = #tpu.core_type<tc>, window_params = [{transform_indices = @transform_0, window_bounds = array<i64: 8, 64>}, {transform_indices = @transform_1, window_bounds = array<i64: 8, 32>}, {transform_indices = @transform_2, window_bounds = array<i64: 8, 64>}]} {
    %c0 = arith.constant 0 : index
    %c0_0 = arith.constant 0 : index
    %0 = vector.load %arg3[%c0, %c0_0] : memref<8x32xf32, #tpu.memory_space<vmem>>, vector<8x32xf32>
    %1 = tpu.concatenate %0, %0 in 1 : vector<8x32xf32>, vector<8x32xf32> -> vector<8x64xf32>
    %c0_1 = arith.constant 0 : index
    %c0_2 = arith.constant 0 : index
    %2 = vector.load %arg2[%c0_1, %c0_2] : memref<8x64xf32, #tpu.memory_space<vmem>>, vector<8x64xf32>
    %3 = arith.addf %2, %1 : vector<8x64xf32>
    %c0_3 = arith.constant 0 : index
    %c0_4 = arith.constant 0 : index
    %4 = vector.load %arg4[%c0_3, %c0_4] : memref<8x64xf32, #tpu.memory_space<vmem>>, vector<8x64xf32>
    tpu.vector_store %arg4[%c0_3, %c0_4], %3 {strides = array<i32>} : memref<8x64xf32, #tpu.memory_space<vmem>>, vector<8x64xf32>,
    return
  }
  func.func @transform_0(%arg0: i32, %arg1: memref<1xi32, #tpu.memory_space<smem>>) -> (i32, i32) {
    %c0_i32 = arith.constant 0 : i32
    %c0_i32_0 = arith.constant 0 : i32
    return %arg0, %c0_i32 : i32, i32
  }
  func.func @transform_1(%arg0: i32, %arg1: memref<1xi32, #tpu.memory_space<smem>>) -> (i32, i32) {
    %c0_i32 = arith.constant 0 : i32
    %c0_i32_0 = arith.constant 0 : i32
    return %arg0, %c0_i32 : i32, i32
  }
  func.func @transform_2(%arg0: i32, %arg1: memref<1xi32, #tpu.memory_space<smem>>) -> (i32, i32) {
    %c0_i32 = arith.constant 0 : i32
    %c0_i32_0 = arith.constant 0 : i32
    return %arg0, %c0_i32 : i32, i32
  }
}

</mosaic_0001>

<llo_original>
// kernel: tpu_custom_call.1
$region0: #{tpu_custom_call.1}
  #allocation0 [shape = 'u32[]', space=smem, size = 0x4, offset = 0x4, fixed_abs, tag = 'smem constant byte address 0x4 - core index']
  #allocation1 [shape = 'u32[144,128]{1,0:T(1,128)}', space=vmem, size = 0x12000, scoped, tag = 'internal scratch']
  #allocation2 [shape = 's32[1]{0}', space=sflag, size = 0x4, scoped, tag = 'scoped memory for tpu_custom_call.1']
  #allocation3 [shape = 's32[1]{0:T(128)S(6)}', space=smem, size = 0x200, scoped, tag = 'prefetched SMEM operand 0']
  %s0 = inlined_call_operand.<no memory space> [shape: s32[1], index: 0, kind: input, shape index: {}]
  %s1 = inlined_call_operand.hbm [shape: f32[8,64], index: 1, kind: input, shape index: {}]
  %s2 = inlined_call_operand.hbm [shape: f32[8,32], index: 2, kind: input, shape index: {}]
  %s3 = inlined_call_operand.hbm [shape: f32[8,64], index: 3, kind: output, shape index: {}]
  %s4 = sld [smem:[#allocation0]]
  $region26: #{tpu_custom_call.1} parent=0
    _
  %s6 = ssub.s32 1, %s4
  %s7 = scalar_select 0, %s6, %s4
  %8 = sst [smem:[#allocation3]] %s0
  $region1: #{tpu_custom_call.1} parent=0
    #allocation4 [shape = 'u8[4096]{0}', space=vmem, size = 0x1000, scoped, tag = 'input window, operand 1, single buffered']
    #allocation5 [shape = 's32[1]{0}', space=sflag, size = 0x4, scoped, tag = 'scoped memory for tpu_custom_call.1']
    #allocation6 [shape = 's32[1]{0}', space=sflag, size = 0x4, scoped, tag = 'scoped memory for tpu_custom_call.1']
    #allocation7 [shape = 'u8[4096]{0}', space=vmem, size = 0x1000, scoped, tag = 'input window, operand 2, single buffered']
    #allocation8 [shape = 's32[1]{0}', space=sflag, size = 0x4, scoped, tag = 'scoped memory for tpu_custom_call.1']
    #allocation9 [shape = 'u8[4096]{0}', space=vmem, size = 0x1000, scoped, tag = 'output window, operand 0, single buffered']
    %9 = vsyncpa [#allocation5], 0
    %10 = vsyncpa [#allocation8], 0
    %11 = vsyncpa [#allocation6], 0
    // Predicated region
    $region2: #{tpu_custom_call.1} parent=1 // pred_check
      _
    $region3: #{tpu_custom_call.1} parent=1 // pred_check_branch
      %13 = sbr.rel (0) target = $region5
    $region4: #{tpu_custom_call.1} parent=1 // pred_region
      %s15 = ssub.s32 128, 128
      %16 = vsyncadd [#allocation5], %s15
      %s18 = sshll.u32 [#allocation4], 4
      %s19 = int_to_ptr.vmem [resolvable:$true] %s18
      %21 = dma.hbm_to_vmem [thread:$0]  %s1, 128, %s19, [#allocation5]
    $region5: #{tpu_custom_call.1} parent=1 // pred_fallthru
      _
    // Predicated region
    $region6: #{tpu_custom_call.1} parent=1 // pred_check
      _
    $region7: #{tpu_custom_call.1} parent=1 // pred_check_branch
      %23 = sbr.rel (0) target = $region9
    $region8: #{tpu_custom_call.1} parent=1 // pred_region
      %s25 = ssub.s32 128, 128
      %26 = vsyncadd [#allocation8], %s25
      %s28 = sshll.u32 [#allocation7], 4
      %s29 = int_to_ptr.vmem [resolvable:$true] %s28
      %31 = dma.hbm_to_vmem [thread:$0]  %s2, 128, %s29, [#allocation8]
    $region9: #{tpu_custom_call.1} parent=1 // pred_fallthru
      _
    // Predicated region
    $region10: #{tpu_custom_call.1} parent=1 // pred_check
      _
    $region11: #{tpu_custom_call.1} parent=1 // pred_check_branch
      %33 = sbr.rel (0) target = $region13
    $region12: #{tpu_custom_call.1} parent=1 // pred_region
      %34 = dma.done [#allocation5], 128
    $region13: #{tpu_custom_call.1} parent=1 // pred_fallthru
      _
    // Predicated region
    $region14: #{tpu_custom_call.1} parent=1 // pred_check
      _
    $region15: #{tpu_custom_call.1} parent=1 // pred_check_branch
      %36 = sbr.rel (0) target = $region17
    $region16: #{tpu_custom_call.1} parent=1 // pred_region
      %37 = dma.done [#allocation8], 128
    $region17: #{tpu_custom_call.1} parent=1 // pred_fallthru
      _
    %v38 = vld [vmem:[#allocation7] sm:$0xff]
    %40 = vrot.lane.b32.xlu0 %v38, 32
    %v41 = vpop.permute.xlu0 %40
    %vm43 = vcmask 261120
    %v44 = vsel %vm43, %v38, %v41
    %v45 = vld [vmem:[#allocation4] sm:$0xff]
    %v46 = vadd.f32 %v45, %v44
    %vm47 = vcmask 523264
    %48 = vst.msk [vmem:[#allocation9] sm:$0xff] %vm47, %v46
    // Predicated region
    $region18: #{tpu_custom_call.1} parent=1 // pred_check
      _
    $region19: #{tpu_custom_call.1} parent=1 // pred_check_branch
      %50 = sbr.rel (0) target = $region21
    $region20: #{tpu_custom_call.1} parent=1 // pred_region
      %s52 = ssub.s32 128, 128
      %53 = vsyncadd [#allocation6], %s52
      %s55 = sshll.u32 [#allocation9], 4
      %s56 = int_to_ptr.vmem [resolvable:$true] %s55
      %58 = dma.vmem_to_hbm [thread:$0]  %s56, 128, %s3, [#allocation6]
    $region21: #{tpu_custom_call.1} parent=1 // pred_fallthru
      _
    // Predicated region
    $region22: #{tpu_custom_call.1} parent=1 // pred_check
      _
    $region23: #{tpu_custom_call.1} parent=1 // pred_check_branch
      %60 = sbr.rel (0) target = $region25
    $region24: #{tpu_custom_call.1} parent=1 // pred_region
      %61 = dma.done [#allocation6], 128
    $region25: #{tpu_custom_call.1} parent=1 // pred_fallthru
      _
    %62 = vsyncpa [#allocation5], 1
    %63 = vsyncpa [#allocation8], 1
    %64 = vsyncpa [#allocation6], 1

</llo_original>
